<compile_context>
chip_gen: v5e
topology: v5e:2x2
jax: 0.10.0
libtpu: 0.0.40
codegen_flags: <defaults>
</compile_context>

<pallas_src>
import functools

import jax
import jax.numpy as jnp
from jax.experimental import pallas as pl
from jax.experimental.pallas import tpu as pltpu


def _round_up(n: int, m: int) -> int:
    return ((n + m - 1) // m) * m


def _dqn_mlp_kernel(x_ref, w1_ref, b1_ref, w2_ref, b2_ref, w3_ref, b3_ref,
                    out_ref, xpad_ref, *, inp):
    """Fused 3-layer MLP on one (TB, I) batch tile.

    x arrives f32 at its logical width and is cast + zero-padded into a
    lane-dense (TB, Ip) bf16 VMEM scratch; matmuls accumulate in f32 on the
    MXU; bias-add / ReLU run in f32 on the VPU.
    """
    ip = xpad_ref.shape[1]
    if inp == ip:
        xpad_ref[...] = x_ref[...].astype(jnp.bfloat16)
    else:
        # Zero every step (scratch is per-core: cheap and correct even when
        # the batch grid is sharded across TensorCores), then fill the valid
        # columns.  Padded columns multiply zero-padded weight rows -> 0.
        xpad_ref[...] = jnp.zeros_like(xpad_ref)
        xpad_ref[:, :inp] = x_ref[...].astype(jnp.bfloat16)
    xb = xpad_ref[...]  # (TB, Ip) bf16

    # Layer 1: Linear + ReLU   (Dropout = identity in eval mode)
    h1 = jnp.dot(xb, w1_ref[...], preferred_element_type=jnp.float32)
    h1 = jnp.maximum(h1 + b1_ref[...], 0.0)           # f32, (1,Hp) broadcasts

    # Layer 2: Linear + ReLU   (Dropout = identity in eval mode)
    h2 = jnp.dot(h1.astype(jnp.bfloat16), w2_ref[...],
                 preferred_element_type=jnp.float32)
    h2 = jnp.maximum(h2 + b2_ref[...], 0.0)

    # Layer 3: Linear (Q-values, no activation)
    q = jnp.dot(h2.astype(jnp.bfloat16), w3_ref[...],
                preferred_element_type=jnp.float32)
    out_ref[...] = (q + b3_ref[...]).astype(out_ref.dtype)


def dqn_forward(x, params, *, batch_tile=1024, small_batch_max=256):
    """Fused DQN MLP forward pass.

    x: (B, input_size) float32
    params: dict from init_dqn_params (128-padded bf16 weights, f32 biases)
    returns: (B, output_size) float32 Q-values
    """
    w1, b1 = params["w1"], params["b1"]
    w2, b2 = params["w2"], params["b2"]
    w3, b3 = params["w3"], params["b3"]
    I, _, O = params["logical_dims"]          # logical (unpadded) sizes

    B = x.shape[0]
    Ip, Hp = w1.shape
    Op = w3.shape[1]

    # Batch tiling (all multiples of 16 so bf16 sublanes stay densely packed):
    #  - tiny batches: one tile (latency path, no per-step overhead).
    #  - large batches: >=2 balanced tiles so v7x's two TensorCores both get
    #    work, capped at batch_tile (large tiles amortize ~0.35us/step).
    batch_tile = _round_up(max(batch_tile, 16), 16)
    B16 = _round_up(B, 16)
    if B16 <= small_batch_max:
        TB = B16
    else:
        TB = min(batch_tile, _round_up((B16 + 1) // 2, 16))
    B_pad = _round_up(B16, TB)
    grid = (B_pad // TB,)

    # Row-pad only when needed (feature dim stays logical; the 128-lane pad +
    # bf16 cast happen in-kernel, so no padded x slab is round-tripped to HBM).
    if B_pad != B:
        x_in = jnp.zeros((B_pad, I), x.dtype).at[:B].set(x)
    else:
        x_in = x

    kernel = functools.partial(_dqn_mlp_kernel, inp=I)

    tiled = lambda shape: pl.BlockSpec(shape, lambda i: (i, 0))
    # Constant index_map -> VMEM-resident across batch steps; Buffered(1)
    # halves their VMEM footprint (matters once hidden_size scales).
    resident = lambda shape: pl.BlockSpec(shape, lambda i: (0, 0),
                                          pipeline_mode=pl.Buffered(1))

    q_full = pl.pallas_call(
        kernel,
        out_shape=jax.ShapeDtypeStruct((B_pad, Op), jnp.float32),
        grid_spec=pltpu.PrefetchScalarGridSpec(
            num_scalar_prefetch=0,
            grid=grid,
            in_specs=[
                tiled((TB, I)),                          # x tile, pipelined
                resident((Ip, Hp)), resident((1, Hp)),   # W1, b1 (resident)
                resident((Hp, Hp)), resident((1, Hp)),   # W2, b2
                resident((Hp, Op)), resident((1, Op)),   # W3, b3
            ],
            out_specs=tiled((TB, Op)),
            scratch_shapes=[pltpu.VMEM((TB, Ip), jnp.bfloat16)],  # padded x
        ),
        compiler_params=pltpu.CompilerParams(
            # batch axis is independent -> shard across v7x's 2 TensorCores
            dimension_semantics=("parallel",),
        ),
    )(x_in, w1, b1, w2, b2, w3, b3)

    return q_full[:B, :O]


def xavier_uniform(key, fan_in, fan_out, dtype=jnp.float32):
    """Matches torch.nn.init.xavier_uniform_ (gain=1)."""
    limit = jnp.sqrt(6.0 / (fan_in + fan_out))
    return jax.random.uniform(key, (fan_in, fan_out), dtype=dtype,
                              minval=-limit, maxval=limit)


def init_dqn_params(key, input_size, hidden_size, output_size):
    """Xavier weights / zero biases, zero-padded to 128-lane-aligned shapes.

    Weights are stored bf16 (halves DMA bytes, MXU-native); biases stay f32.
    """
    k1, k2, k3 = jax.random.split(key, 3)
    I, H, O = input_size, hidden_size, output_size
    Ip, Hp, Op = _round_up(I, 128), _round_up(H, 128), _round_up(O, 128)

    def pad_w(w, rows, cols):
        out = jnp.zeros((rows, cols), jnp.bfloat16)
        return out.at[:w.shape[0], :w.shape[1]].set(w.astype(jnp.bfloat16))

    return {
        "w1": pad_w(xavier_uniform(k1, I, H), Ip, Hp),
        "b1": jnp.zeros((1, Hp), jnp.float32),
        "w2": pad_w(xavier_uniform(k2, H, H), Hp, Hp),
        "b2": jnp.zeros((1, Hp), jnp.float32),
        "w3": pad_w(xavier_uniform(k3, H, O), Hp, Op),
        "b3": jnp.zeros((1, Op), jnp.float32),
        "logical_dims": (I, H, O),
    }


def dqn_forward_ref(x, params):
    """Pure-JAX reference with identical bf16/f32 numerics (tight check)."""
    I, _, O = params["logical_dims"]
    xb = x.astype(jnp.bfloat16)
    h = jnp.maximum(jnp.dot(xb, params["w1"][:I],
                            preferred_element_type=jnp.float32)
                    + params["b1"], 0.0)
    h = jnp.maximum(jnp.dot(h.astype(jnp.bfloat16), params["w2"],
                            preferred_element_type=jnp.float32)
                    + params["b2"], 0.0)
    q = jnp.dot(h.astype(jnp.bfloat16), params["w3"],
                preferred_element_type=jnp.float32) + params["b3"]
    return q[:, :O]


def dqn_forward_ref_f32(x, params):
    """All-f32 reference on the unpadded slices (loose check on padding)."""
    I, H, O = params["logical_dims"]
    w1 = params["w1"][:I, :H].astype(jnp.float32)
    w2 = params["w2"][:H, :H].astype(jnp.float32)
    w3 = params["w3"][:H, :O].astype(jnp.float32)
    b1 = params["b1"][:, :H]
    b2 = params["b2"][:, :H]
    b3 = params["b3"][:, :O]
    h = jnp.maximum(x @ w1 + b1, 0.0)
    h = jnp.maximum(h @ w2 + b2, 0.0)
    return h @ w3 + b3


if __name__ == "__main__":
    input_size, hidden_size, output_size = 16, 32, 4

    key = jax.random.PRNGKey(0)
    k_params, k_x1, k_x2 = jax.random.split(key, 3)
    params = init_dqn_params(k_params, input_size, hidden_size, output_size)

    fwd = jax.jit(functools.partial(dqn_forward, params=params))

    # --- small latency-bound batch (single grid step) ---
    batch = 8
    x = jax.random.normal(k_x1, (batch, input_size), dtype=jnp.float32)
    q_values = fwd(x)
    jax.block_until_ready(q_values)
    assert q_values.shape == (batch, output_size)

    q_ref = dqn_forward_ref(x, params)
    assert jnp.allclose(q_values, q_ref, atol=1e-2, rtol=1e-2), \
        float(jnp.max(jnp.abs(q_values - q_ref)))
    q_f32 = dqn_forward_ref_f32(x, params)
    assert jnp.allclose(q_values, q_f32, atol=1e-1, rtol=5e-2), \
        float(jnp.max(jnp.abs(q_values - q_f32)))

    # --- larger batch (exercises the >=2-step grid / resident-weight path) ---
    batch2 = 512
    x2 = jax.random.normal(k_x2, (batch2, input_size), dtype=jnp.float32)
    q2 = jax.jit(functools.partial(dqn_forward, params=params))(x2)
    jax.block_until_ready(q2)
    assert q2.shape == (batch2, output_size)
    q2_ref = dqn_forward_ref(x2, params)
    assert jnp.allclose(q2, q2_ref, atol=1e-2, rtol=1e-2), \
        float(jnp.max(jnp.abs(q2 - q2_ref)))

    print("KERNEL_OK")
</pallas_src>

<mosaic_0001>
module attributes {stable_mosaic.version = 11 : i64} {
  func.func @_dqn_mlp_kernel(%arg0: i32, %arg1: memref<16x16xf32, #tpu.memory_space<vmem>>, %arg2: memref<128x128xbf16, #tpu.memory_space<vmem>>, %arg3: memref<1x128xf32, #tpu.memory_space<vmem>>, %arg4: memref<128x128xbf16, #tpu.memory_space<vmem>>, %arg5: memref<1x128xf32, #tpu.memory_space<vmem>>, %arg6: memref<128x128xbf16, #tpu.memory_space<vmem>>, %arg7: memref<1x128xf32, #tpu.memory_space<vmem>>, %arg8: memref<16x128xf32, #tpu.memory_space<vmem>>, %arg9: memref<16x128xbf16, #tpu.memory_space<vmem>>) attributes {dimension_semantics = [#tpu.dimension_semantics<parallel>], iteration_bounds = array<i64: 1>, scalar_prefetch = 0 : i64, scratch_operands = 1 : i64, tpu.core_type = #tpu.core_type<tc>, window_params = [{transform_indices = @transform_0, window_bounds = array<i64: 16, 16>}, {pipeline_mode = #tpu.pipeline_mode<synchronous>, transform_indices = @transform_1, window_bounds = array<i64: 128, 128>}, {pipeline_mode = #tpu.pipeline_mode<synchronous>, transform_indices = @transform_2, window_bounds = array<i64: 1, 128>}, {pipeline_mode = #tpu.pipeline_mode<synchronous>, transform_indices = @transform_3, window_bounds = array<i64: 128, 128>}, {pipeline_mode = #tpu.pipeline_mode<synchronous>, transform_indices = @transform_4, window_bounds = array<i64: 1, 128>}, {pipeline_mode = #tpu.pipeline_mode<synchronous>, transform_indices = @transform_5, window_bounds = array<i64: 128, 128>}, {pipeline_mode = #tpu.pipeline_mode<synchronous>, transform_indices = @transform_6, window_bounds = array<i64: 1, 128>}, {transform_indices = @transform_7, window_bounds = array<i64: 16, 128>}]} {
    %cst = arith.constant 0.000000e+00 : bf16
    %0 = vector.broadcast %cst : bf16 to vector<16x128xbf16>
    %c0 = arith.constant 0 : index
    %c0_0 = arith.constant 0 : index
    %1 = vector.load %arg9[%c0, %c0_0] : memref<16x128xbf16, #tpu.memory_space<vmem>>, vector<16x128xbf16>
    tpu.vector_store %arg9[%c0, %c0_0], %0 {strides = array<i32>} : memref<16x128xbf16, #tpu.memory_space<vmem>>, vector<16x128xbf16>,
    %c0_1 = arith.constant 0 : index
    %c0_2 = arith.constant 0 : index
    %2 = vector.load %arg1[%c0_1, %c0_2] : memref<16x16xf32, #tpu.memory_space<vmem>>, vector<16x16xf32>
    %3 = arith.truncf %2 : vector<16x16xf32> to vector<16x16xbf16>
    %c0_3 = arith.constant 0 : index
    %c0_4 = arith.constant 0 : index
    %4 = vector.load %arg9[%c0_3, %c0_4] : memref<16x128xbf16, #tpu.memory_space<vmem>>, vector<16x16xbf16>
    tpu.vector_store %arg9[%c0_3, %c0_4], %3 {strides = array<i32>} : memref<16x128xbf16, #tpu.memory_space<vmem>>, vector<16x16xbf16>,
    %c0_5 = arith.constant 0 : index
    %c0_6 = arith.constant 0 : index
    %5 = vector.load %arg9[%c0_5, %c0_6] : memref<16x128xbf16, #tpu.memory_space<vmem>>, vector<16x128xbf16>
    %c0_7 = arith.constant 0 : index
    %c0_8 = arith.constant 0 : index
    %6 = vector.load %arg2[%c0_7, %c0_8] : memref<128x128xbf16, #tpu.memory_space<vmem>>, vector<128x128xbf16>
    %cst_9 = arith.constant dense<0.000000e+00> : vector<16x128xf32>
    %7 = tpu.matmul %5, %6, %cst_9 {dimension_numbers = #tpu.dot_dimension_numbers<[1], [0], [0], [1], [0, 0, 1, 1], [], []>} : vector<16x128xbf16>, vector<128x128xbf16>, vector<16x128xf32> -> vector<16x128xf32>
    %c0_10 = arith.constant 0 : index
    %c0_11 = arith.constant 0 : index
    %8 = vector.load %arg3[%c0_10, %c0_11] : memref<1x128xf32, #tpu.memory_space<vmem>>, vector<1x128xf32>
    %9 = vector.broadcast %8 : vector<1x128xf32> to vector<16x128xf32>
    %10 = arith.addf %7, %9 : vector<16x128xf32>
    %cst_12 = arith.constant 0.000000e+00 : f32
    %11 = vector.broadcast %cst_12 : f32 to vector<16x128xf32>
    %12 = arith.maximumf %10, %11 : vector<16x128xf32>
    %13 = arith.truncf %12 : vector<16x128xf32> to vector<16x128xbf16>
    %c0_13 = arith.constant 0 : index
    %c0_14 = arith.constant 0 : index
    %14 = vector.load %arg4[%c0_13, %c0_14] : memref<128x128xbf16, #tpu.memory_space<vmem>>, vector<128x128xbf16>
    %cst_15 = arith.constant dense<0.000000e+00> : vector<16x128xf32>
    %15 = tpu.matmul %13, %14, %cst_15 {dimension_numbers = #tpu.dot_dimension_numbers<[1], [0], [0], [1], [0, 0, 1, 1], [], []>} : vector<16x128xbf16>, vector<128x128xbf16>, vector<16x128xf32> -> vector<16x128xf32>
    %c0_16 = arith.constant 0 : index
    %c0_17 = arith.constant 0 : index
    %16 = vector.load %arg5[%c0_16, %c0_17] : memref<1x128xf32, #tpu.memory_space<vmem>>, vector<1x128xf32>
    %17 = vector.broadcast %16 : vector<1x128xf32> to vector<16x128xf32>
    %18 = arith.addf %15, %17 : vector<16x128xf32>
    %cst_18 = arith.constant 0.000000e+00 : f32
    %19 = vector.broadcast %cst_18 : f32 to vector<16x128xf32>
    %20 = arith.maximumf %18, %19 : vector<16x128xf32>
    %21 = arith.truncf %20 : vector<16x128xf32> to vector<16x128xbf16>
    %c0_19 = arith.constant 0 : index
    %c0_20 = arith.constant 0 : index
    %22 = vector.load %arg6[%c0_19, %c0_20] : memref<128x128xbf16, #tpu.memory_space<vmem>>, vector<128x128xbf16>
    %cst_21 = arith.constant dense<0.000000e+00> : vector<16x128xf32>
    %23 = tpu.matmul %21, %22, %cst_21 {dimension_numbers = #tpu.dot_dimension_numbers<[1], [0], [0], [1], [0, 0, 1, 1], [], []>} : vector<16x128xbf16>, vector<128x128xbf16>, vector<16x128xf32> -> vector<16x128xf32>
    %c0_22 = arith.constant 0 : index
    %c0_23 = arith.constant 0 : index
    %24 = vector.load %arg7[%c0_22, %c0_23] : memref<1x128xf32, #tpu.memory_space<vmem>>, vector<1x128xf32>
    %25 = vector.broadcast %24 : vector<1x128xf32> to vector<16x128xf32>
    %26 = arith.addf %23, %25 : vector<16x128xf32>
    %c0_24 = arith.constant 0 : index
    %c0_25 = arith.constant 0 : index
    %27 = vector.load %arg8[%c0_24, %c0_25] : memref<16x128xf32, #tpu.memory_space<vmem>>, vector<16x128xf32>
    tpu.vector_store %arg8[%c0_24, %c0_25], %26 {strides = array<i32>} : memref<16x128xf32, #tpu.memory_space<vmem>>, vector<16x128xf32>,
    return
  }
  func.func @transform_0(%arg0: i32) -> (i32, i32) {
    %c0_i32 = arith.constant 0 : i32
    %c0_i32_0 = arith.constant 0 : i32
    return %arg0, %c0_i32 : i32, i32
  }
  func.func @transform_1(%arg0: i32) -> (i32, i32) {
    %c0_i32 = arith.constant 0 : i32
    %c0_i32_0 = arith.constant 0 : i32
    %c0_i32_1 = arith.constant 0 : i32
    return %c0_i32, %c0_i32_0 : i32, i32
  }
  func.func @transform_2(%arg0: i32) -> (i32, i32) {
    %c0_i32 = arith.constant 0 : i32
    %c0_i32_0 = arith.constant 0 : i32
    %c0_i32_1 = arith.constant 0 : i32
    return %c0_i32, %c0_i32_0 : i32, i32
  }
  func.func @transform_3(%arg0: i32) -> (i32, i32) {
    %c0_i32 = arith.constant 0 : i32
    %c0_i32_0 = arith.constant 0 : i32
    %c0_i32_1 = arith.constant 0 : i32
    return %c0_i32, %c0_i32_0 : i32, i32
  }
  func.func @transform_4(%arg0: i32) -> (i32, i32) {
    %c0_i32 = arith.constant 0 : i32
    %c0_i32_0 = arith.constant 0 : i32
    %c0_i32_1 = arith.constant 0 : i32
    return %c0_i32, %c0_i32_0 : i32, i32
  }
  func.func @transform_5(%arg0: i32) -> (i32, i32) {
    %c0_i32 = arith.constant 0 : i32
    %c0_i32_0 = arith.constant 0 : i32
    %c0_i32_1 = arith.constant 0 : i32
    return %c0_i32, %c0_i32_0 : i32, i32
  }
  func.func @transform_6(%arg0: i32) -> (i32, i32) {
    %c0_i32 = arith.constant 0 : i32
    %c0_i32_0 = arith.constant 0 : i32
    %c0_i32_1 = arith.constant 0 : i32
    return %c0_i32, %c0_i32_0 : i32, i32
  }
  func.func @transform_7(%arg0: i32) -> (i32, i32) {
    %c0_i32 = arith.constant 0 : i32
    %c0_i32_0 = arith.constant 0 : i32
    return %arg0, %c0_i32 : i32, i32
  }
}

</mosaic_0001>

<llo_original>
// kernel: dqn_forward.1
$region0: #{dqn_forward.1}
  #allocation0 [shape = 'u32[]', space=smem, size = 0x4, offset = 0x4, fixed_abs, tag = 'smem constant byte address 0x4 - core index']
  #allocation1 [shape = 'u32[72,128]{1,0:T(1,128)}', space=vmem, size = 0x9000, scoped, tag = 'internal scratch']
  #allocation2 [shape = 'bf16[16,128]{1,0:T(8,128)(2,1)}', space=vmem, size = 0x1000, scoped, tag = 'scratch operand']
  %s0 = inlined_call_operand.vmem [shape: f32[16,16], index: 0, kind: input, shape index: {}]
  %s1 = inlined_call_operand.hbm [shape: bf16[128,128], index: 1, kind: input, shape index: {}]
  %s2 = inlined_call_operand.vmem [shape: f32[1,128], index: 2, kind: input, shape index: {}, may-alias: {2,4,6}]
  %s3 = inlined_call_operand.hbm [shape: bf16[128,128], index: 3, kind: input, shape index: {}]
  %s4 = inlined_call_operand.vmem [shape: f32[1,128], index: 4, kind: input, shape index: {}, may-alias: {2,4,6}]
  %s5 = inlined_call_operand.hbm [shape: bf16[128,128], index: 5, kind: input, shape index: {}]
  %s6 = inlined_call_operand.vmem [shape: f32[1,128], index: 6, kind: input, shape index: {}, may-alias: {2,4,6}]
  %s7 = inlined_call_operand.vmem [shape: f32[16,128], index: 7, kind: output, shape index: {}]
  %s8 = sld [smem:[#allocation0]]
  $region50: #{dqn_forward.1} parent=0
    _
  %s10 = ssub.s32 1, %s8
  %s11 = scalar_select 0, %s10, %s8
  $region1: #{dqn_forward.1} parent=0
    #allocation3 [shape = 'u8[32768]{0}', space=vmem, size = 0x8000, scoped, tag = 'input window, operand 1, single buffered']
    #allocation4 [shape = 's32[1]{0}', space=sflag, size = 0x4, scoped, tag = 'scoped memory for dqn_forward.1']
    #allocation5 [shape = 'u8[32768]{0}', space=vmem, size = 0x8000, scoped, tag = 'input window, operand 3, single buffered']
    #allocation6 [shape = 's32[1]{0}', space=sflag, size = 0x4, scoped, tag = 'scoped memory for dqn_forward.1']
    #allocation7 [shape = 'u8[32768]{0}', space=vmem, size = 0x8000, scoped, tag = 'input window, operand 5, single buffered']
    %12 = vsyncpa [#allocation4], 0
    %13 = vsyncpa [#allocation6], 0
    // Predicated region
    $region2: #{dqn_forward.1} parent=1 // pred_check
      _
    $region3: #{dqn_forward.1} parent=1 // pred_check_branch
      %15 = sbr.rel (0) target = $region5
    $region4: #{dqn_forward.1} parent=1 // pred_region
      _
    $region5: #{dqn_forward.1} parent=1 // pred_fallthru
      _
    // Predicated region
    $region6: #{dqn_forward.1} parent=1 // pred_check
      _
    $region7: #{dqn_forward.1} parent=1 // pred_check_branch
      %17 = sbr.rel (0) target = $region9
    $region8: #{dqn_forward.1} parent=1 // pred_region
      %19 = vsyncadd [#allocation4], 0
      %s20 = sshll.u32 %s1, 4
      %s21 = int_to_ptr.hbm [resolvable:$true] %s20
      %s22 = sshll.u32 [#allocation3], 4
      %s23 = int_to_ptr.vmem [resolvable:$true] %s22
      %28 = dma.hbm_to_vmem [thread:$0]  %s21, 1024, %s23, [#allocation4], 64, 64, 4
    $region9: #{dqn_forward.1} parent=1 // pred_fallthru
      _
    // Predicated region
    $region10: #{dqn_forward.1} parent=1 // pred_check
      _
    $region11: #{dqn_forward.1} parent=1 // pred_check_branch
      %30 = sbr.rel (0) target = $region13
    $region12: #{dqn_forward.1} parent=1 // pred_region
      _
    $region13: #{dqn_forward.1} parent=1 // pred_fallthru
      _
    // Predicated region
    $region14: #{dqn_forward.1} parent=1 // pred_check
      _
    $region15: #{dqn_forward.1} parent=1 // pred_check_branch
      %32 = sbr.rel (0) target = $region17
    $region16: #{dqn_forward.1} parent=1 // pred_region
      %34 = vsyncadd [#allocation6], 0
      %s35 = sshll.u32 %s3, 4
      %s36 = int_to_ptr.hbm [resolvable:$true] %s35
      %s37 = sshll.u32 [#allocation5], 4
      %s38 = int_to_ptr.vmem [resolvable:$true] %s37
      %43 = dma.hbm_to_vmem [thread:$0]  %s36, 1024, %s38, [#allocation6], 64, 64, 4
    $region17: #{dqn_forward.1} parent=1 // pred_fallthru
      _
    // Predicated region
    $region18: #{dqn_forward.1} parent=1 // pred_check
      _
    $region19: #{dqn_forward.1} parent=1 // pred_check_branch
      %45 = sbr.rel (0) target = $region21
    $region20: #{dqn_forward.1} parent=1 // pred_region
      _
    $region21: #{dqn_forward.1} parent=1 // pred_fallthru
      _
    // Predicated region
    $region22: #{dqn_forward.1} parent=1 // pred_check
      _
    $region23: #{dqn_forward.1} parent=1 // pred_check_branch
      %47 = sbr.rel (0) target = $region25
    $region24: #{dqn_forward.1} parent=1 // pred_region
      %49 = vsyncadd [#allocation6], 0
      %s50 = sshll.u32 %s5, 4
      %s51 = int_to_ptr.hbm [resolvable:$true] %s50
      %s52 = sshll.u32 [#allocation7], 4
      %s53 = int_to_ptr.vmem [resolvable:$true] %s52
      %58 = dma.hbm_to_vmem [thread:$0]  %s51, 1024, %s53, [#allocation6], 64, 64, 4
    $region25: #{dqn_forward.1} parent=1 // pred_fallthru
      _
    // Predicated region
    $region26: #{dqn_forward.1} parent=1 // pred_check
      _
    $region27: #{dqn_forward.1} parent=1 // pred_check_branch
      %60 = sbr.rel (0) target = $region29
    $region28: #{dqn_forward.1} parent=1 // pred_region
      _
    $region29: #{dqn_forward.1} parent=1 // pred_fallthru
      _
    // Predicated region
    $region30: #{dqn_forward.1} parent=1 // pred_check
      _
    $region31: #{dqn_forward.1} parent=1 // pred_check_branch
      %62 = sbr.rel (0) target = $region33
    $region32: #{dqn_forward.1} parent=1 // pred_region
      %64 = dma.done [#allocation4], 1024
    $region33: #{dqn_forward.1} parent=1 // pred_fallthru
      _
    // Predicated region
    $region34: #{dqn_forward.1} parent=1 // pred_check
      _
    $region35: #{dqn_forward.1} parent=1 // pred_check_branch
      %66 = sbr.rel (0) target = $region37
    $region36: #{dqn_forward.1} parent=1 // pred_region
      %68 = dma.done [#allocation6], 1024
    $region37: #{dqn_forward.1} parent=1 // pred_fallthru
      _
    // Predicated region
    $region38: #{dqn_forward.1} parent=1 // pred_check
      _
    $region39: #{dqn_forward.1} parent=1 // pred_check_branch
      %70 = sbr.rel (0) target = $region41
    $region40: #{dqn_forward.1} parent=1 // pred_region
      %72 = dma.done [#allocation6], 1024
    $region41: #{dqn_forward.1} parent=1 // pred_fallthru
      _
    %74 = vst [vmem:[#allocation2] sm:$0xf] 0
    %75 = vst [vmem:[#allocation2 + $0x4] sm:$0xf] 0
    %v76 = vld [vmem:[%s0] sm:$0xff]
    %v77 = vld [vmem:[%s0 + $0x8] sm:$0xff]
    %v78 = vpack.c.bf16 %v76, %v76
    %v79 = vpack.c.bf16 %v77, %v77
    %vm80 = vcmask 125952
    %81 = vst.msk [vmem:[#allocation2] sm:$0xf] %vm80, %v78
    %82 = vst.msk [vmem:[#allocation2 + $0x4] sm:$0xf] %vm80, %v79
    %v83 = vld [vmem:[#allocation2] sm:$0xf]
    %v84 = vld [vmem:[#allocation2 + $0x4] sm:$0xf]
    %v85 = vld [vmem:[#allocation3] sm:$0xf]
    %v86 = vld [vmem:[#allocation3 + $0x4] sm:$0xf]
    %v87 = vld [vmem:[#allocation3 + $0x8] sm:$0xf]
    %v88 = vld [vmem:[#allocation3 + $0xc] sm:$0xf]
    %v89 = vld [vmem:[#allocation3 + $0x10] sm:$0xf]
    %v90 = vld [vmem:[#allocation3 + $0x14] sm:$0xf]
    %v91 = vld [vmem:[#allocation3 + $0x18] sm:$0xf]
    %v92 = vld [vmem:[#allocation3 + $0x1c] sm:$0xf]
    %v93 = vld [vmem:[#allocation3 + $0x20] sm:$0xf]
    %v94 = vld [vmem:[#allocation3 + $0x24] sm:$0xf]
    %v95 = vld [vmem:[#allocation3 + $0x28] sm:$0xf]
    %v96 = vld [vmem:[#allocation3 + $0x2c] sm:$0xf]
    %v97 = vld [vmem:[#allocation3 + $0x30] sm:$0xf]
    %v98 = vld [vmem:[#allocation3 + $0x34] sm:$0xf]
    %v99 = vld [vmem:[#allocation3 + $0x38] sm:$0xf]
    %v100 = vld [vmem:[#allocation3 + $0x3c] sm:$0xf]
    %v101 = vld [vmem:[%s2] sm:$0x1]
    %v103 = vperm.slane %v101, 0
    %v107 = vunpack.c.l.b16 %v83
    %v108 = vunpack.c.l.b16 %v84
    %v109 = vpack.c.b16 %v108, %v107
    %v127 = vunpack.c.l.b16 %v85
    %v128 = vunpack.c.l.b16 %v86
    %v129 = vunpack.c.l.b16 %v87
    %v130 = vunpack.c.l.b16 %v88
    %v131 = vunpack.c.l.b16 %v89
    %v132 = vunpack.c.l.b16 %v90
    %v133 = vunpack.c.l.b16 %v91
    %v134 = vunpack.c.l.b16 %v92
    %v135 = vunpack.c.l.b16 %v93
    %v136 = vunpack.c.l.b16 %v94
    %v137 = vunpack.c.l.b16 %v95
    %v138 = vunpack.c.l.b16 %v96
    %v139 = vunpack.c.l.b16 %v97
    %v140 = vunpack.c.l.b16 %v98
    %v141 = vunpack.c.l.b16 %v99
    %v142 = vunpack.c.l.b16 %v100
    %v143 = vpack.c.b16 %v128, %v127
    %v144 = vpack.c.b16 %v130, %v129
    %v145 = vpack.c.b16 %v132, %v131
    %v146 = vpack.c.b16 %v134, %v133
    %v147 = vpack.c.b16 %v136, %v135
    %v148 = vpack.c.b16 %v138, %v137
    %v149 = vpack.c.b16 %v140, %v139
    %v150 = vpack.c.b16 %v142, %v141
    %159 = vmatpush.bf16.msra.mxu0 %v150
    %160 = vmatpush.bf16.msra.mxu0 %v149
    %161 = vmatpush.bf16.msra.mxu0 %v148
    %162 = vmatpush.bf16.msra.mxu0 %v147
    %163 = vmatpush.bf16.msra.mxu0 %v146
    %164 = vmatpush.bf16.msra.mxu0 %v145
    %165 = vmatpush.bf16.msra.mxu0 %v144
    %166 = vmatpush.bf16.msra.mxu0 %v143
    %167 = vmatmul.bf16.gmra.mxu0 %v109
    %v168 = vpop.f32.mrf.mxu0
    %v169 = vadd.f32 %v103, %v168
    %v170 = vpop.f32.mrf.mxu0
    %v171 = vadd.f32 %v103, %v170
    %172 = vdwg.mxu0
    %v173 = vmax.f32 %v169, 0.0
    %v174 = vmax.f32 %v171, 0.0
    %v175 = vpack.c.bf16 %v174, %v173
    %v176 = vld [vmem:[#allocation5] sm:$0xf]
    %v177 = vld [vmem:[#allocation5 + $0x4] sm:$0xf]
    %v178 = vld [vmem:[#allocation5 + $0x8] sm:$0xf]
    %v179 = vld [vmem:[#allocation5 + $0xc] sm:$0xf]
    %v180 = vld [vmem:[#allocation5 + $0x10] sm:$0xf]
    %v181 = vld [vmem:[#allocation5 + $0x14] sm:$0xf]
    %v182 = vld [vmem:[#allocation5 + $0x18] sm:$0xf]
    %v183 = vld [vmem:[#allocation5 + $0x1c] sm:$0xf]
    %v184 = vld [vmem:[#allocation5 + $0x20] sm:$0xf]
    %v185 = vld [vmem:[#allocation5 + $0x24] sm:$0xf]
    %v186 = vld [vmem:[#allocation5 + $0x28] sm:$0xf]
    %v187 = vld [vmem:[#allocation5 + $0x2c] sm:$0xf]
    %v188 = vld [vmem:[#allocation5 + $0x30] sm:$0xf]
    %v189 = vld [vmem:[#allocation5 + $0x34] sm:$0xf]
    %v190 = vld [vmem:[#allocation5 + $0x38] sm:$0xf]
    %v191 = vld [vmem:[#allocation5 + $0x3c] sm:$0xf]
    %v192 = vld [vmem:[%s4] sm:$0x1]
    %v194 = vperm.slane %v192, 0
    %v212 = vunpack.c.l.b16 %v176
    %v213 = vunpack.c.l.b16 %v177
    %v214 = vunpack.c.l.b16 %v178
    %v215 = vunpack.c.l.b16 %v179
    %v216 = vunpack.c.l.b16 %v180
    %v217 = vunpack.c.l.b16 %v181
    %v218 = vunpack.c.l.b16 %v182
    %v219 = vunpack.c.l.b16 %v183
    %v220 = vunpack.c.l.b16 %v184
    %v221 = vunpack.c.l.b16 %v185
    %v222 = vunpack.c.l.b16 %v186
    %v223 = vunpack.c.l.b16 %v187
    %v224 = vunpack.c.l.b16 %v188
    %v225 = vunpack.c.l.b16 %v189
    %v226 = vunpack.c.l.b16 %v190
    %v227 = vunpack.c.l.b16 %v191
    %v228 = vpack.c.b16 %v213, %v212
    %v229 = vpack.c.b16 %v215, %v214
    %v230 = vpack.c.b16 %v217, %v216
    %v231 = vpack.c.b16 %v219, %v218
    %v232 = vpack.c.b16 %v221, %v220
    %v233 = vpack.c.b16 %v223, %v222
    %v234 = vpack.c.b16 %v225, %v224
    %v235 = vpack.c.b16 %v227, %v226
    %244 = vmatpush.bf16.msra.mxu0 %v235
    %245 = vmatpush.bf16.msra.mxu0 %v234
    %246 = vmatpush.bf16.msra.mxu0 %v233
    %247 = vmatpush.bf16.msra.mxu0 %v232
    %248 = vmatpush.bf16.msra.mxu0 %v231
    %249 = vmatpush.bf16.msra.mxu0 %v230
    %250 = vmatpush.bf16.msra.mxu0 %v229
    %251 = vmatpush.bf16.msra.mxu0 %v228
    %252 = vmatmul.bf16.gmra.mxu0 %v175
    %v253 = vpop.f32.mrf.mxu0
    %v254 = vadd.f32 %v194, %v253
    %v255 = vpop.f32.mrf.mxu0
    %v256 = vadd.f32 %v194, %v255
    %257 = vdwg.mxu0
    %v258 = vmax.f32 %v254, 0.0
    %v259 = vmax.f32 %v256, 0.0
    %v260 = vpack.c.bf16 %v259, %v258
    %v261 = vld [vmem:[#allocation7] sm:$0xf]
    %v262 = vld [vmem:[#allocation7 + $0x4] sm:$0xf]
    %v263 = vld [vmem:[#allocation7 + $0x8] sm:$0xf]
    %v264 = vld [vmem:[#allocation7 + $0xc] sm:$0xf]
    %v265 = vld [vmem:[#allocation7 + $0x10] sm:$0xf]
    %v266 = vld [vmem:[#allocation7 + $0x14] sm:$0xf]
    %v267 = vld [vmem:[#allocation7 + $0x18] sm:$0xf]
    %v268 = vld [vmem:[#allocation7 + $0x1c] sm:$0xf]
    %v269 = vld [vmem:[#allocation7 + $0x20] sm:$0xf]
    %v270 = vld [vmem:[#allocation7 + $0x24] sm:$0xf]
    %v271 = vld [vmem:[#allocation7 + $0x28] sm:$0xf]
    %v272 = vld [vmem:[#allocation7 + $0x2c] sm:$0xf]
    %v273 = vld [vmem:[#allocation7 + $0x30] sm:$0xf]
    %v274 = vld [vmem:[#allocation7 + $0x34] sm:$0xf]
    %v275 = vld [vmem:[#allocation7 + $0x38] sm:$0xf]
    %v276 = vld [vmem:[#allocation7 + $0x3c] sm:$0xf]
    %v277 = vld [vmem:[%s6] sm:$0x1]
    %v279 = vperm.slane %v277, 0
    %v297 = vunpack.c.l.b16 %v261
    %v298 = vunpack.c.l.b16 %v262
    %v299 = vunpack.c.l.b16 %v263
    %v300 = vunpack.c.l.b16 %v264
    %v301 = vunpack.c.l.b16 %v265
    %v302 = vunpack.c.l.b16 %v266
    %v303 = vunpack.c.l.b16 %v267
    %v304 = vunpack.c.l.b16 %v268
    %v305 = vunpack.c.l.b16 %v269
    %v306 = vunpack.c.l.b16 %v270
    %v307 = vunpack.c.l.b16 %v271
    %v308 = vunpack.c.l.b16 %v272
    %v309 = vunpack.c.l.b16 %v273
    %v310 = vunpack.c.l.b16 %v274
    %v311 = vunpack.c.l.b16 %v275
    %v312 = vunpack.c.l.b16 %v276
    %v313 = vpack.c.b16 %v298, %v297
    %v314 = vpack.c.b16 %v300, %v299
    %v315 = vpack.c.b16 %v302, %v301
    %v316 = vpack.c.b16 %v304, %v303
    %v317 = vpack.c.b16 %v306, %v305
    %v318 = vpack.c.b16 %v308, %v307
    %v319 = vpack.c.b16 %v310, %v309
    %v320 = vpack.c.b16 %v312, %v311
    %329 = vmatpush.bf16.msra.mxu0 %v320
    %330 = vmatpush.bf16.msra.mxu0 %v319
    %331 = vmatpush.bf16.msra.mxu0 %v318
    %332 = vmatpush.bf16.msra.mxu0 %v317
    %333 = vmatpush.bf16.msra.mxu0 %v316
    %334 = vmatpush.bf16.msra.mxu0 %v315
    %335 = vmatpush.bf16.msra.mxu0 %v314
    %336 = vmatpush.bf16.msra.mxu0 %v313
    %337 = vmatmul.bf16.gmra.mxu0 %v260
    %v338 = vpop.f32.mrf.mxu0
    %v339 = vadd.f32 %v279, %v338
    %v340 = vpop.f32.mrf.mxu0
    %v341 = vadd.f32 %v279, %v340
    %342 = vdwg.mxu0
    %343 = vst [vmem:[%s7] sm:$0xff] %v339
    %344 = vst [vmem:[%s7 + $0x8] sm:$0xff] %v341
    // Predicated region
    $region42: #{dqn_forward.1} parent=1 // pred_check
      _
    $region43: #{dqn_forward.1} parent=1 // pred_check_branch
      %346 = sbr.rel (0) target = $region45
    $region44: #{dqn_forward.1} parent=1 // pred_region
      _
    $region45: #{dqn_forward.1} parent=1 // pred_fallthru
      _
    // Predicated region
    $region46: #{dqn_forward.1} parent=1 // pred_check
      _
    $region47: #{dqn_forward.1} parent=1 // pred_check_branch
      %348 = sbr.rel (0) target = $region49
    $region48: #{dqn_forward.1} parent=1 // pred_region
      _
    $region49: #{dqn_forward.1} parent=1 // pred_fallthru
      _
    %349 = vsyncpa [#allocation4], 1
    %350 = vsyncpa [#allocation6], 1

</llo_original>
